<compile_context>
chip_gen: v5e
topology: v5e:2x2
jax: 0.10.0
libtpu: 0.0.40
codegen_flags: <defaults>
</compile_context>

<pallas_src>
import functools
import math

import jax
import jax.numpy as jnp
from jax.experimental import pallas as pl
from jax.experimental.pallas import tpu as pltpu


_MAX_TILE_ROWS = 4096


def _round_up(x, m):
    return ((x + m - 1) // m) * m


def _tpu_config():
    """Generation-aware knobs: (two_tensorcores, vmem data budget, scoped vmem limit)."""
    kind = ""
    try:
        kind = jax.devices()[0].device_kind.lower()
    except Exception:
        pass
    two_cores = ("v7" in kind) or ("7x" in kind)   # v7x: 2 TCs, 64 MiB VMEM per TC

    vmem_cap = None
    try:
        vmem_cap = int(pltpu.get_tpu_info().vmem_capacity_bytes)
    except Exception:
        vmem_cap = None
    if vmem_cap is None or vmem_cap <= 0:
        if ("v5" in kind) or ("v6" in kind):
            vmem_cap = 128 * 1024 * 1024
        else:
            vmem_cap = 64 * 1024 * 1024            # conservative fallback

    if two_cores:
        data_budget = 16 * 1024 * 1024
        vmem_limit = min(36 * 1024 * 1024, (vmem_cap * 3) // 5)
    else:
        data_budget = 32 * 1024 * 1024
        vmem_limit = min(96 * 1024 * 1024, (vmem_cap * 3) // 4)
    return two_cores, data_budget, int(vmem_limit)


def _choose_batch_tile(batch, dist, itemsize, quantum, data_budget, two_cores, cap=None):
    """Batch-axis tile: multiple of `quantum`, VMEM-budgeted, full batch when it fits."""
    # 2 inputs x 2 pipeline buffers + ~10 live f32 temporaries per element.
    per_row = (2 * 2 * itemsize + 10 * 4) * dist
    tb = max(quantum, data_budget // max(per_row, 1))
    tb = min(tb, _MAX_TILE_ROWS)
    if cap is not None:
        tb = min(tb, max(int(cap), quantum))
    if two_cores and batch > quantum:
        # keep >= 2 grid steps so both v7x TensorCores get work
        tb = min(tb, _round_up(-(-batch // 2), quantum))
    tb = max(quantum, (tb // quantum) * quantum)
    if tb >= batch:
        return int(batch)            # single full-extent tile (always layout-legal)
    return int(tb)


def _make_slad_kernel(*, tb, batch, transposed, fuse, accumulate):
    red_ax = 0 if transposed else 1      # distribution axis inside the block
    bat_ax = 1 if transposed else 0      # batch axis inside the block
    needs_mask = fuse and (batch % tb != 0)

    def kernel(yp_ref, yt_ref, out_ref):
        yp = yp_ref[...].astype(jnp.float32)
        yt = yt_ref[...].astype(jnp.float32)

        def softmax(x):
            mx = jnp.max(x, axis=red_ax, keepdims=True)
            e = jnp.exp(x - mx)
            return e * (1.0 / jnp.sum(e, axis=red_ax, keepdims=True))  # 1 divide/row

        p = softmax(yp)                          # F.softmax(y_pred, dim=1)
        q = softmax(yt)                          # F.softmax(y_true, dim=1)
        m = 0.5 * (p + q)                        # total_m

        # js_row = 2*sum(m*log m) - 2*sum(m*m) + LSE(p) + LSE(q)
        # == sum(kl_div(log_softmax(p), m) + kl_div(log_softmax(q), m), dim=1)
        # (uses sum(m) = 1; the max-shift in log_softmax(softmax(x)) is an
        #  exact algebraic no-op; the m == 0 -> 0 rule of F.kl_div is kept).
        mlogm = jnp.where(m > 0.0, m * jnp.log(m), 0.0)
        lse_p = jnp.log(jnp.sum(jnp.exp(p), axis=red_ax, keepdims=True))
        lse_q = jnp.log(jnp.sum(jnp.exp(q), axis=red_ax, keepdims=True))
        js = (2.0 * jnp.sum(mlogm - m * m, axis=red_ax, keepdims=True)
              + lse_p + lse_q)                   # (1, tb) or (tb, 1)

        if fuse:
            if needs_mask:                       # ragged tail: junk rows -> 0
                base = pl.program_id(0) * tb
                rid = jax.lax.broadcasted_iota(jnp.int32, js.shape, bat_ax) + base
                js = jnp.where(rid < batch, js, 0.0)
            partial = jnp.sum(js, axis=bat_ax, keepdims=True)   # (1, 1)
            if accumulate:
                # single-TC chips: resident output block as the accumulator
                @pl.when(pl.program_id(0) == 0)
                def _init():
                    out_ref[...] = jnp.zeros_like(out_ref)
                out_ref[...] += partial
            else:
                out_ref[...] = partial.reshape(1, 1, 1)
        else:
            out_ref[...] = js

    return kernel


@functools.partial(jax.jit, static_argnames=("reduction", "tile_cap"))
def slad_loss(y_pred, y_true, reduction="mean", tile_cap=None):
    assert reduction in ("mean", "none", "sum"), "unsupported reduction operation"
    assert y_pred.ndim == 2 and y_pred.shape == y_true.shape
    B, D = y_pred.shape
    itemsize = jnp.dtype(y_pred.dtype).itemsize

    two_cores, data_budget, vmem_limit = _tpu_config()

    # Lane-dense layout: put the larger of (batch, dist) on the 128-lane axis.
    transposed = (D < 128) and (B > D)
    if transposed:
        a, b = y_pred.T, y_true.T    # (D, B): batch on lanes
        quantum = 128                # lane-axis tiles: multiple of 128 (or full B)
    else:
        a, b = y_pred, y_true        # (B, D): dist already lane dense
        quantum = 8                  # sublane-axis tiles: multiple of 8 (or full B)

    tb = _choose_batch_tile(B, D, itemsize, quantum, data_budget, two_cores, tile_cap)
    num_tiles = -(-B // tb)          # ragged tail handled by masking, no jnp.pad copy
    fuse = reduction in ("mean", "sum")
    accumulate = fuse and not two_cores

    kernel = _make_slad_kernel(tb=tb, batch=B, transposed=transposed,
                               fuse=fuse, accumulate=accumulate)

    if transposed:
        in_spec = pl.BlockSpec((D, tb), lambda i: (0, i))
    else:
        in_spec = pl.BlockSpec((tb, D), lambda i: (i, 0))

    if fuse:
        if accumulate:
            out_shape = jax.ShapeDtypeStruct((1, 1), jnp.float32)
            out_spec = pl.BlockSpec((1, 1), lambda i: (0, 0))
            semantics = ("arbitrary",)
        else:
            out_shape = jax.ShapeDtypeStruct((num_tiles, 1, 1), jnp.float32)
            out_spec = pl.BlockSpec((1, 1, 1), lambda i: (i, 0, 0))
            semantics = ("parallel",)
    else:
        if transposed:
            out_shape = jax.ShapeDtypeStruct((1, B), jnp.float32)   # lane-dense
            out_spec = pl.BlockSpec((1, tb), lambda i: (0, i))
        else:
            out_shape = jax.ShapeDtypeStruct((B, 1), jnp.float32)
            out_spec = pl.BlockSpec((tb, 1), lambda i: (i, 0))
        semantics = ("parallel",)

    out_bytes = math.prod(out_shape.shape) * 4
    cost = pl.CostEstimate(flops=int(14 * B * D),
                           transcendentals=int(5 * B * D),
                           bytes_accessed=int(2 * B * D * itemsize + out_bytes))

    out = pl.pallas_call(
        kernel,
        out_shape=out_shape,
        grid_spec=pltpu.PrefetchScalarGridSpec(
            num_scalar_prefetch=0,
            grid=(num_tiles,),
            in_specs=[in_spec, in_spec],
            out_specs=out_spec,
        ),
        compiler_params=pltpu.CompilerParams(
            # TODO(synk): on v7x, try pltpu.CORE_PARALLEL here to pin the 2-TC split.
            dimension_semantics=semantics,
            vmem_limit_bytes=vmem_limit,
        ),
        cost_estimate=cost,
    )(a, b)

    if reduction == "mean":
        total = out[0, 0] if accumulate else jnp.sum(out)
        return total / jnp.float32(B)
    if reduction == "sum":
        return out[0, 0] if accumulate else jnp.sum(out)
    # 'none'
    return out[0] if transposed else out[:, 0]


def _ref_slad_loss(y_pred, y_true, reduction="mean"):
    # pure-JAX reference mirroring the PyTorch forward (incl. kl_div's m==0 rule)
    p = jax.nn.softmax(y_pred.astype(jnp.float32), axis=1)
    q = jax.nn.softmax(y_true.astype(jnp.float32), axis=1)
    m = 0.5 * (p + q)
    lsp = jax.nn.log_softmax(p, axis=1)
    lsq = jax.nn.log_softmax(q, axis=1)
    kl1 = jnp.where(m > 0, m * (jnp.log(m) - lsp), 0.0)
    kl2 = jnp.where(m > 0, m * (jnp.log(m) - lsq), 0.0)
    js = jnp.sum(kl1 + kl2, axis=1)
    if reduction == "mean":
        return jnp.mean(js)
    elif reduction == "sum":
        return jnp.sum(js)
    return js


def _check(got, ref, atol=3e-5, rtol=3e-5):
    got = jax.block_until_ready(got)
    assert jnp.allclose(got, ref, atol=atol, rtol=rtol), (got, ref)


if __name__ == "__main__":
    key = jax.random.PRNGKey(0)
    k1, k2, k3, k4, k5, k6, k7, k8 = jax.random.split(key, 8)

    # small shape matching the module contract: [batch_size, distribution_size]
    batch, dist_size = 8, 32
    y_pred = jax.random.normal(k1, (batch, dist_size), dtype=jnp.float32)
    y_true = jax.random.normal(k2, (batch, dist_size), dtype=jnp.float32)
    loss = slad_loss(y_pred, y_true, reduction="mean")
    jax.block_until_ready(loss)
    _check(loss, _ref_slad_loss(y_pred, y_true, "mean"))

    # ragged batch, [B, D] layout, other reductions
    yp = jax.random.normal(k3, (13, dist_size), dtype=jnp.float32)
    yt = jax.random.normal(k4, (13, dist_size), dtype=jnp.float32)
    _check(slad_loss(yp, yt, "none"), _ref_slad_loss(yp, yt, "none"))
    _check(slad_loss(yp, yt, "sum"), _ref_slad_loss(yp, yt, "sum"))

    # lane-dense [D, B] path: multi-tile grid + ragged tail masking (no padding)
    yp = jax.random.normal(k5, (300, dist_size), dtype=jnp.float32)
    yt = jax.random.normal(k6, (300, dist_size), dtype=jnp.float32)
    _check(slad_loss(yp, yt, "mean", tile_cap=128), _ref_slad_loss(yp, yt, "mean"))
    _check(slad_loss(yp, yt, "none", tile_cap=128), _ref_slad_loss(yp, yt, "none"))

    # large-D [B, D] path: multi-tile grid + ragged tail
    yp = jax.random.normal(k7, (20, 256), dtype=jnp.float32)
    yt = jax.random.normal(k8, (20, 256), dtype=jnp.float32)
    _check(slad_loss(yp, yt, "sum", tile_cap=8), _ref_slad_loss(yp, yt, "sum"))
    _check(slad_loss(yp, yt, "none", tile_cap=8), _ref_slad_loss(yp, yt, "none"))

    print("KERNEL_OK")
</pallas_src>

<mosaic_0001>
module attributes {stable_mosaic.version = 11 : i64} {
  func.func @kernel(%arg0: i32, %arg1: memref<8x32xf32, #tpu.memory_space<vmem>>, %arg2: memref<8x32xf32, #tpu.memory_space<vmem>>, %arg3: memref<1x1xf32, #tpu.memory_space<vmem>>) attributes {dimension_semantics = [#tpu.dimension_semantics<arbitrary>], iteration_bounds = array<i64: 1>, scalar_prefetch = 0 : i64, scratch_operands = 0 : i64, tpu.core_type = #tpu.core_type<tc>, window_params = [{transform_indices = @transform_0, window_bounds = array<i64: 8, 32>}, {transform_indices = @transform_1, window_bounds = array<i64: 8, 32>}, {pipeline_mode = #tpu.pipeline_mode<synchronous>, transform_indices = @transform_2, window_bounds = array<i64: 1, 1>}]} {
    %c0 = arith.constant 0 : index
    %c0_0 = arith.constant 0 : index
    %0 = vector.load %arg1[%c0, %c0_0] : memref<8x32xf32, #tpu.memory_space<vmem>>, vector<8x32xf32>
    %c0_1 = arith.constant 0 : index
    %c0_2 = arith.constant 0 : index
    %1 = vector.load %arg2[%c0_1, %c0_2] : memref<8x32xf32, #tpu.memory_space<vmem>>, vector<8x32xf32>
    %cst = arith.constant dense<0xFF800000> : vector<8xf32>
    %2 = vector.multi_reduction <maximumf>, %0, %cst [1] : vector<8x32xf32> to vector<8xf32>
    %3 = vector.shape_cast %2 : vector<8xf32> to vector<8x1xf32>
    %4 = vector.broadcast %3 : vector<8x1xf32> to vector<8x32xf32>
    %5 = arith.subf %0, %4 : vector<8x32xf32>
    %6 = math.exp %5 : vector<8x32xf32>
    %cst_3 = arith.constant dense<0.000000e+00> : vector<8xf32>
    %7 = vector.multi_reduction <add>, %6, %cst_3 [1] : vector<8x32xf32> to vector<8xf32>
    %8 = vector.shape_cast %7 : vector<8xf32> to vector<8x1xf32>
    %cst_4 = arith.constant 1.000000e+00 : f32
    %9 = vector.broadcast %cst_4 : f32 to vector<8x1xf32>
    %10 = arith.divf %9, %8 : vector<8x1xf32>
    %11 = vector.broadcast %10 : vector<8x1xf32> to vector<8x32xf32>
    %12 = arith.mulf %6, %11 : vector<8x32xf32>
    %cst_5 = arith.constant dense<0xFF800000> : vector<8xf32>
    %13 = vector.multi_reduction <maximumf>, %1, %cst_5 [1] : vector<8x32xf32> to vector<8xf32>
    %14 = vector.shape_cast %13 : vector<8xf32> to vector<8x1xf32>
    %15 = vector.broadcast %14 : vector<8x1xf32> to vector<8x32xf32>
    %16 = arith.subf %1, %15 : vector<8x32xf32>
    %17 = math.exp %16 : vector<8x32xf32>
    %cst_6 = arith.constant dense<0.000000e+00> : vector<8xf32>
    %18 = vector.multi_reduction <add>, %17, %cst_6 [1] : vector<8x32xf32> to vector<8xf32>
    %19 = vector.shape_cast %18 : vector<8xf32> to vector<8x1xf32>
    %cst_7 = arith.constant 1.000000e+00 : f32
    %20 = vector.broadcast %cst_7 : f32 to vector<8x1xf32>
    %21 = arith.divf %20, %19 : vector<8x1xf32>
    %22 = vector.broadcast %21 : vector<8x1xf32> to vector<8x32xf32>
    %23 = arith.mulf %17, %22 : vector<8x32xf32>
    %24 = arith.addf %12, %23 : vector<8x32xf32>
    %cst_8 = arith.constant 5.000000e-01 : f32
    %25 = vector.broadcast %cst_8 : f32 to vector<8x32xf32>
    %26 = arith.mulf %25, %24 : vector<8x32xf32>
    %cst_9 = arith.constant 0.000000e+00 : f32
    %27 = vector.broadcast %cst_9 : f32 to vector<8x32xf32>
    %28 = arith.cmpf ogt, %26, %27 : vector<8x32xf32>
    %29 = math.log %26 : vector<8x32xf32>
    %30 = arith.mulf %26, %29 : vector<8x32xf32>
    %cst_10 = arith.constant 0.000000e+00 : f32
    %31 = vector.broadcast %cst_10 : f32 to vector<8x32xf32>
    %32 = arith.select %28, %30, %31 : vector<8x32xi1>, vector<8x32xf32>
    %33 = math.exp %12 : vector<8x32xf32>
    %cst_11 = arith.constant dense<0.000000e+00> : vector<8xf32>
    %34 = vector.multi_reduction <add>, %33, %cst_11 [1] : vector<8x32xf32> to vector<8xf32>
    %35 = vector.shape_cast %34 : vector<8xf32> to vector<8x1xf32>
    %36 = math.log %35 : vector<8x1xf32>
    %37 = math.exp %23 : vector<8x32xf32>
    %cst_12 = arith.constant dense<0.000000e+00> : vector<8xf32>
    %38 = vector.multi_reduction <add>, %37, %cst_12 [1] : vector<8x32xf32> to vector<8xf32>
    %39 = vector.shape_cast %38 : vector<8xf32> to vector<8x1xf32>
    %40 = math.log %39 : vector<8x1xf32>
    %41 = arith.mulf %26, %26 : vector<8x32xf32>
    %42 = arith.subf %32, %41 : vector<8x32xf32>
    %cst_13 = arith.constant dense<0.000000e+00> : vector<8xf32>
    %43 = vector.multi_reduction <add>, %42, %cst_13 [1] : vector<8x32xf32> to vector<8xf32>
    %44 = vector.shape_cast %43 : vector<8xf32> to vector<8x1xf32>
    %cst_14 = arith.constant 2.000000e+00 : f32
    %45 = vector.broadcast %cst_14 : f32 to vector<8x1xf32>
    %46 = arith.mulf %45, %44 : vector<8x1xf32>
    %47 = arith.addf %46, %36 : vector<8x1xf32>
    %48 = arith.addf %47, %40 : vector<8x1xf32>
    %cst_15 = arith.constant dense<0.000000e+00> : vector<1xf32>
    %49 = vector.multi_reduction <add>, %48, %cst_15 [0] : vector<8x1xf32> to vector<1xf32>
    %50 = vector.shape_cast %49 : vector<1xf32> to vector<1x1xf32>
    %c0_i32 = arith.constant 0 : i32
    %51 = arith.cmpi eq, %arg0, %c0_i32 : i32
    %52 = arith.extui %51 : i1 to i32
    %c0_i32_16 = arith.constant 0 : i32
    %53 = arith.cmpi ne, %52, %c0_i32_16 : i32
    scf.if %53 {
      %cst_21 = arith.constant 0.000000e+00 : f32
      %57 = vector.broadcast %cst_21 : f32 to vector<1x1xf32>
      %c0_22 = arith.constant 0 : index
      %c0_23 = arith.constant 0 : index
      %58 = vector.load %arg3[%c0_22, %c0_23] : memref<1x1xf32, #tpu.memory_space<vmem>>, vector<1x1xf32>
      tpu.vector_store %arg3[%c0_22, %c0_23], %57 {strides = array<i32>} : memref<1x1xf32, #tpu.memory_space<vmem>>, vector<1x1xf32>,
    } else {
    }
    %c0_17 = arith.constant 0 : index
    %c0_18 = arith.constant 0 : index
    %54 = vector.load %arg3[%c0_17, %c0_18] : memref<1x1xf32, #tpu.memory_space<vmem>>, vector<1x1xf32>
    %55 = arith.addf %54, %50 : vector<1x1xf32>
    %c0_19 = arith.constant 0 : index
    %c0_20 = arith.constant 0 : index
    %56 = vector.load %arg3[%c0_19, %c0_20] : memref<1x1xf32, #tpu.memory_space<vmem>>, vector<1x1xf32>
    tpu.vector_store %arg3[%c0_19, %c0_20], %55 {strides = array<i32>} : memref<1x1xf32, #tpu.memory_space<vmem>>, vector<1x1xf32>,
    return
  }
  func.func @transform_0(%arg0: i32) -> (i32, i32) {
    %c0_i32 = arith.constant 0 : i32
    %c0_i32_0 = arith.constant 0 : i32
    return %arg0, %c0_i32 : i32, i32
  }
  func.func @transform_1(%arg0: i32) -> (i32, i32) {
    %c0_i32 = arith.constant 0 : i32
    %c0_i32_0 = arith.constant 0 : i32
    return %arg0, %c0_i32 : i32, i32
  }
  func.func @transform_2(%arg0: i32) -> (i32, i32) {
    %c0_i32 = arith.constant 0 : i32
    %c0_i32_0 = arith.constant 0 : i32
    %c0_i32_1 = arith.constant 0 : i32
    return %c0_i32, %c0_i32_0 : i32, i32
  }
}

</mosaic_0001>

<llo_original>
// kernel: slad_loss.1
$region0: #{slad_loss.1}
  #allocation0 [shape = 'u32[]', space=smem, size = 0x4, offset = 0x4, fixed_abs, tag = 'smem constant byte address 0x4 - core index']
  #allocation1 [shape = 'u32[72,128]{1,0:T(1,128)}', space=vmem, size = 0x9000, scoped, tag = 'internal scratch']
  %s0 = inlined_call_operand.hbm [shape: f32[8,32], index: 0, kind: input, shape index: {}]
  %s1 = inlined_call_operand.hbm [shape: f32[8,32], index: 1, kind: input, shape index: {}]
  %s2 = inlined_call_operand.hbm [shape: f32[1,1], index: 2, kind: output, shape index: {}]
  %s3 = sld [smem:[#allocation0]]
  $region30: #{slad_loss.1} parent=0
    _
  %s5 = ssub.s32 1, %s3
  %s6 = scalar_select 0, %s5, %s3
  $region1: #{slad_loss.1} parent=0
    #allocation2 [shape = 'u8[4096]{0}', space=vmem, size = 0x1000, scoped, tag = 'input window, operand 0, single buffered']
    #allocation3 [shape = 's32[1]{0}', space=sflag, size = 0x4, scoped, tag = 'scoped memory for slad_loss.1']
    #allocation4 [shape = 's32[1]{0}', space=sflag, size = 0x4, scoped, tag = 'scoped memory for slad_loss.1']
    #allocation5 [shape = 'u8[4096]{0}', space=vmem, size = 0x1000, scoped, tag = 'input window, operand 1, single buffered']
    #allocation6 [shape = 's32[1]{0}', space=sflag, size = 0x4, scoped, tag = 'scoped memory for slad_loss.1']
    #allocation7 [shape = 'u8[512]{0}', space=vmem, size = 0x400, scoped, tag = 'output window, operand 0, single buffered']
    %7 = vsyncpa [#allocation3], 0
    %8 = vsyncpa [#allocation6], 0
    %9 = vsyncpa [#allocation4], 0
    // Predicated region
    $region2: #{slad_loss.1} parent=1 // pred_check
      _
    $region3: #{slad_loss.1} parent=1 // pred_check_branch
      %11 = sbr.rel (0) target = $region5
    $region4: #{slad_loss.1} parent=1 // pred_region
      %13 = vsyncadd [#allocation3], 0
      %s15 = sshll.u32 %s0, 4
      %s16 = int_to_ptr.hbm [resolvable:$true] %s15
      %s17 = sshll.u32 [#allocation2], 4
      %s18 = int_to_ptr.vmem [resolvable:$true] %s17
      %20 = dma.hbm_to_vmem [thread:$0]  %s16, 128, %s18, [#allocation3]
    $region5: #{slad_loss.1} parent=1 // pred_fallthru
      _
    // Predicated region
    $region6: #{slad_loss.1} parent=1 // pred_check
      _
    $region7: #{slad_loss.1} parent=1 // pred_check_branch
      %22 = sbr.rel (0) target = $region9
    $region8: #{slad_loss.1} parent=1 // pred_region
      %24 = vsyncadd [#allocation6], 0
      %s26 = sshll.u32 %s1, 4
      %s27 = int_to_ptr.hbm [resolvable:$true] %s26
      %s28 = sshll.u32 [#allocation5], 4
      %s29 = int_to_ptr.vmem [resolvable:$true] %s28
      %31 = dma.hbm_to_vmem [thread:$0]  %s27, 128, %s29, [#allocation6]
    $region9: #{slad_loss.1} parent=1 // pred_fallthru
      _
    // Predicated region
    $region10: #{slad_loss.1} parent=1 // pred_check
      _
    $region11: #{slad_loss.1} parent=1 // pred_check_branch
      %33 = sbr.rel (0) target = $region13
    $region12: #{slad_loss.1} parent=1 // pred_region
      %35 = dma.done [#allocation3], 128
    $region13: #{slad_loss.1} parent=1 // pred_fallthru
      _
    // Predicated region
    $region14: #{slad_loss.1} parent=1 // pred_check
      _
    $region15: #{slad_loss.1} parent=1 // pred_check_branch
      %37 = sbr.rel (0) target = $region17
    $region16: #{slad_loss.1} parent=1 // pred_region
      %39 = dma.done [#allocation6], 128
    $region17: #{slad_loss.1} parent=1 // pred_fallthru
      _
    %v40 = vld [vmem:[#allocation2] sm:$0xff]
    %v41 = vld [vmem:[#allocation5] sm:$0xff]
    %vm42 = vcmask 261120
    %v43 = vsel %vm42, %v40, -inf
    %44 = vmax.xlane.f32.xlu0 %v43
    %v45 = vpop.xlane.xlu0 %44
    %v46 = vsub.f32 %v40, %v45
    %v47 = vmul.f32 %v46, 1.442695
    %v48 = vpow.pop %v47
    %v49 = vsel %vm42, %v48, 0.0
    %50 = vadd.xlane.f32.xlu0 %v49
    %v51 = vpop.xlane.xlu0 %50
    %v52 = vrcp.pop %v51
    %v53 = vmul.f32 %v51, %v52
    %v54 = vsub.f32 1.0, %v53
    %v55 = vmul.f32 %v52, %v54
    %v56 = vadd.f32 %v52, %v55
    %vm57 = vweird.f32 %v51
    %vm58 = vweird.f32 %v52
    %vm59 = vmor %vm57, %vm58
    %v60 = vsel %vm59, %v52, %v56
    %v61 = vand.u32 2147483647, %v51
    %vm62 = vcmp.eq.f32.partialorder %v61, 8.507059e+37
    %v63 = vand.u32 %v51, 2147483648
    %v64 = vor.u32 1.1754944e-38, %v63
    %v65 = vsel %vm62, %v64, %v60
    %v66 = vmul.f32 1.0, %v65
    %v67 = vmul.f32 %v48, %v66
    %v68 = vsel %vm42, %v41, -inf
    %69 = vmax.xlane.f32.xlu0 %v68
    %v70 = vpop.xlane.xlu0 %69
    %v71 = vsub.f32 %v41, %v70
    %v72 = vmul.f32 %v71, 1.442695
    %v73 = vpow.pop %v72
    %v74 = vsel %vm42, %v73, 0.0
    %75 = vadd.xlane.f32.xlu0 %v74
    %v76 = vpop.xlane.xlu0 %75
    %v77 = vrcp.pop %v76
    %v78 = vmul.f32 %v76, %v77
    %v79 = vsub.f32 1.0, %v78
    %v80 = vmul.f32 %v77, %v79
    %v81 = vadd.f32 %v77, %v80
    %vm82 = vweird.f32 %v76
    %vm83 = vweird.f32 %v77
    %vm84 = vmor %vm82, %vm83
    %v85 = vsel %vm84, %v77, %v81
    %v86 = vand.u32 2147483647, %v76
    %vm87 = vcmp.eq.f32.partialorder %v86, 8.507059e+37
    %v88 = vand.u32 %v76, 2147483648
    %v89 = vor.u32 1.1754944e-38, %v88
    %v90 = vsel %vm87, %v89, %v85
    %v91 = vmul.f32 1.0, %v90
    %v92 = vmul.f32 %v73, %v91
    %v93 = vadd.f32 %v67, %v92
    %v94 = vmul.f32 %v93, 0.5
    %vm95 = vcmp.gt.f32.partialorder %v94, 0.0
    %v96 = vlog2.pop %v94
    %v97 = vmul.f32 %v96, 0.6931472
    %v98 = vmul.f32 %v94, %v97
    %v99 = vsel %vm95, %v98, 0.0
    %v100 = vmul.f32 %v67, 1.442695
    %v101 = vpow.pop %v100
    %v102 = vsel %vm42, %v101, 0.0
    %103 = vadd.xlane.f32.xlu0 %v102
    %v104 = vpop.xlane.xlu0 %103
    %v105 = vlog2.pop %v104
    %v106 = vmul.f32 %v105, 0.6931472
    %v107 = vmul.f32 %v92, 1.442695
    %v108 = vpow.pop %v107
    %v109 = vsel %vm42, %v108, 0.0
    %110 = vadd.xlane.f32.xlu0 %v109
    %v111 = vpop.xlane.xlu0 %110
    %v112 = vlog2.pop %v111
    %v113 = vmul.f32 %v112, 0.6931472
    %v114 = vmul.f32 %v94, %v94
    %v115 = vsub.f32 %v99, %v114
    %v116 = vsel %vm42, %v115, 0.0
    %117 = vadd.xlane.f32.xlu0 %v116
    %v118 = vpop.xlane.xlu0 %117
    %v119 = vmul.f32 %v118, 2.0
    %v120 = vadd.f32 %v119, %v106
    %v121 = vadd.f32 %v120, %v113
    %v122 = vrot.slane %v121, 4
    %v123 = vadd.f32 %v121, %v122
    %v124 = vrot.slane %v123, 2
    %v125 = vadd.f32 %v123, %v124
    %v126 = vrot.slane %v125, 1
    %v127 = vadd.f32 %v125, %v126
    %p128 = scmp.eq.s32.totalorder 0, 0
    // Predicated region
    $region18: #{slad_loss.1} parent=1 // pred_check
      %p129 = pneg %p128
    $region19: #{slad_loss.1} parent=1 // pred_check_branch
      %131 = sbr.rel (%p129) target = $region21
    $region20: #{slad_loss.1} parent=1 // pred_region
      %vm132 = vcmask 0
      %133 = vst.msk [vmem:[#allocation7] sm:$0x1] %vm132, 0.0
    $region21: #{slad_loss.1} parent=1 // pred_fallthru
      _
    %v134 = vld [vmem:[#allocation7] sm:$0x1]
    %v135 = vadd.f32 %v134, %v127
    %vm136 = vcmask 0
    %137 = vst.msk [vmem:[#allocation7] sm:$0x1] %vm136, %v135
    // Predicated region
    $region22: #{slad_loss.1} parent=1 // pred_check
      _
    $region23: #{slad_loss.1} parent=1 // pred_check_branch
      %139 = sbr.rel (0) target = $region25
    $region24: #{slad_loss.1} parent=1 // pred_region
      %141 = vsyncadd [#allocation4], 0
      %s143 = sshll.u32 [#allocation7], 4
      %s144 = int_to_ptr.vmem [resolvable:$true] %s143
      %s145 = sshll.u32 %s2, 4
      %s146 = int_to_ptr.hbm [resolvable:$true] %s145
      %148 = dma.vmem_to_hbm [thread:$0]  %s144, 16, %s146, [#allocation4]
    $region25: #{slad_loss.1} parent=1 // pred_fallthru
      _
    // Predicated region
    $region26: #{slad_loss.1} parent=1 // pred_check
      _
    $region27: #{slad_loss.1} parent=1 // pred_check_branch
      %150 = sbr.rel (0) target = $region29
    $region28: #{slad_loss.1} parent=1 // pred_region
      %152 = dma.done [#allocation4], 16
    $region29: #{slad_loss.1} parent=1 // pred_fallthru
      _
    %153 = vsyncpa [#allocation3], 1
    %154 = vsyncpa [#allocation6], 1
    %155 = vsyncpa [#allocation4], 1

</llo_original>
